<compile_context>
chip_gen: v7x
topology: tpu7x:2x2x1
jax: 0.10.0
libtpu: 0.0.40
codegen_flags: <defaults>
</compile_context>

<pallas_src>
import jax
import jax.numpy as jnp
from jax.experimental import pallas as pl
from jax.experimental.pallas import tpu as pltpu


def _round_up(x, m):
    return ((x + m - 1) // m) * m


def _make_upsample_kernel(upsample, bc):
    def kernel(x_ref, o_ref):
        # x_ref: (bt, BC)        one block of input rows (lane-dense)
        # o_ref: (bt, U*BC)      same rows, replicated U times along lanes
        x = x_ref[...]
        for u in range(upsample):                 # static unroll, U stores
            o_ref[:, u * bc:(u + 1) * bc] = x
    return kernel


def simple_upsample(src, upsample, *, row_block=None,
                    vmem_budget_bytes=32 * 1024 * 1024):
    """src: (seq_len, batch, num_channels) -> (seq_len*upsample, batch, num_channels)."""
    T, B, C = src.shape
    U = int(upsample)
    BC = B * C
    dtype = src.dtype
    itemsize = jnp.dtype(dtype).itemsize

    if U == 1:
        return src  # identity; nothing to do

    x2d = src.reshape(T, BC)  # free reshape; lanes = B*C (lane-dense)

    # dtype-aware sublane multiple for tiled (non-full-extent) row blocks.
    sub = {1: 32, 2: 16, 4: 8}.get(itemsize, 8)
    lane = 128

    # Padding-aware per-row bytes (lane dim padded to 128).
    in_row_bytes = _round_up(BC, lane) * itemsize
    out_row_bytes = _round_up(U * BC, lane) * itemsize

    if row_block is not None:
        bt = int(row_block)
    else:
        # Largest row block whose double-buffered in+out blocks fit the budget.
        bt = vmem_budget_bytes // (2 * (in_row_bytes + out_row_bytes))
        bt = max(sub, (bt // sub) * sub)
        # Keep >= 2 grid blocks when possible so v7x megacore can shard rows.
        if T >= 2 * sub:
            half = _round_up(-(-T // 2), sub)
            bt = min(bt, half)
    if bt >= T:
        bt = T  # single full-extent block (no (8,128) divisibility constraint)

    grid = pl.cdiv(T, bt)  # ragged last block: OOB reads ignored, OOB writes dropped

    # Explicit scoped-VMEM limit: double-buffered in+out blocks plus headroom,
    # kept well under v7x's 64 MiB physical VMEM per TensorCore.
    vmem_need = 2 * bt * (in_row_bytes + out_row_bytes)
    vmem_limit = int(min(max(vmem_need + (4 << 20), 16 << 20), 48 << 20))

    out2d = pl.pallas_call(
        _make_upsample_kernel(U, BC),
        out_shape=jax.ShapeDtypeStruct((T, U * BC), dtype),
        grid_spec=pltpu.PrefetchScalarGridSpec(
            num_scalar_prefetch=0,
            grid=(grid,),
            in_specs=[pl.BlockSpec((bt, BC), lambda i: (i, 0))],
            out_specs=pl.BlockSpec((bt, U * BC), lambda i: (i, 0)),
        ),
        compiler_params=pltpu.CompilerParams(
            dimension_semantics=("parallel",),
            vmem_limit_bytes=vmem_limit,
        ),
        cost_estimate=pl.CostEstimate(
            flops=0,
            transcendentals=0,
            bytes_accessed=int((1 + U) * T * BC * itemsize),
        ),
    )(x2d)

    # (T, U*BC) is contiguous -> reshape to (T*U, B, C) is free and matches the
    # PyTorch unsqueeze/expand/reshape layout exactly.
    return out2d.reshape(T * U, B, C)


def _reference(src, upsample):
    # PyTorch: src.unsqueeze(1).expand(T, U, B, C).reshape(T*U, B, C)
    return jnp.repeat(src, upsample, axis=0)


if __name__ == "__main__":
    key = jax.random.PRNGKey(0)
    k1, k2, k3 = jax.random.split(key, 3)

    # Case 1: small shapes consistent with the module (seq=8, batch=2, ch=32, U=2),
    # single full-extent block path.
    T, B, C, U = 8, 2, 32, 2
    x = jax.random.normal(k1, (T, B, C), dtype=jnp.float32)
    y = jax.block_until_ready(simple_upsample(x, U))
    assert y.shape == (T * U, B, C)
    assert jnp.array_equal(y, _reference(x, U)), "mismatch vs reference (case 1)"

    # Case 2: forced small row block -> multiple grid blocks + ragged last block
    # (T=20 not a multiple of bt=8); exercises the no-pad remainder path.
    T2, B2, C2, U2 = 20, 3, 20, 3
    x2 = jax.random.normal(k2, (T2, B2, C2), dtype=jnp.float32)
    y2 = jax.block_until_ready(simple_upsample(x2, U2, row_block=8))
    assert y2.shape == (T2 * U2, B2, C2)
    assert jnp.array_equal(y2, _reference(x2, U2)), "mismatch vs reference (case 2)"

    # Case 3: bf16 (sublane multiple 16), auto block selection with >=2 grid
    # blocks and a ragged tail.
    T3, B3, C3, U3 = 40, 4, 64, 2
    x3 = jax.random.normal(k3, (T3, B3, C3), dtype=jnp.float32).astype(jnp.bfloat16)
    y3 = jax.block_until_ready(simple_upsample(x3, U3))
    assert y3.shape == (T3 * U3, B3, C3)
    assert jnp.array_equal(y3, _reference(x3, U3)), "mismatch vs reference (case 3)"

    print("KERNEL_OK")
</pallas_src>

<mosaic_0001>
module attributes {stable_mosaic.version = 11 : i64} {
  func.func @kernel(%arg0: i32, %arg1: memref<8x64xf32, #tpu.memory_space<vmem>>, %arg2: memref<8x128xf32, #tpu.memory_space<vmem>>) attributes {dimension_semantics = [#tpu.dimension_semantics<parallel>], iteration_bounds = array<i64: 1>, scalar_prefetch = 0 : i64, scratch_operands = 0 : i64, tpu.core_type = #tpu.core_type<tc>, window_params = [{transform_indices = @transform_0, window_bounds = array<i64: 8, 64>}, {transform_indices = @transform_1, window_bounds = array<i64: 8, 128>}]} {
    %c0 = arith.constant 0 : index
    %c0_0 = arith.constant 0 : index
    %0 = vector.load %arg1[%c0, %c0_0] : memref<8x64xf32, #tpu.memory_space<vmem>>, vector<8x64xf32>
    %c0_1 = arith.constant 0 : index
    %c0_2 = arith.constant 0 : index
    %1 = vector.load %arg2[%c0_1, %c0_2] : memref<8x128xf32, #tpu.memory_space<vmem>>, vector<8x64xf32>
    tpu.vector_store %arg2[%c0_1, %c0_2], %0 {strides = array<i32>} : memref<8x128xf32, #tpu.memory_space<vmem>>, vector<8x64xf32>,
    %c0_3 = arith.constant 0 : index
    %c64 = arith.constant 64 : index
    %2 = vector.load %arg2[%c0_3, %c64] : memref<8x128xf32, #tpu.memory_space<vmem>>, vector<8x64xf32>
    tpu.vector_store %arg2[%c0_3, %c64], %0 {strides = array<i32>} : memref<8x128xf32, #tpu.memory_space<vmem>>, vector<8x64xf32>,
    return
  }
  func.func @transform_0(%arg0: i32) -> (i32, i32) {
    %c0_i32 = arith.constant 0 : i32
    %c0_i32_0 = arith.constant 0 : i32
    return %arg0, %c0_i32 : i32, i32
  }
  func.func @transform_1(%arg0: i32) -> (i32, i32) {
    %c0_i32 = arith.constant 0 : i32
    %c0_i32_0 = arith.constant 0 : i32
    return %arg0, %c0_i32 : i32, i32
  }
}

</mosaic_0001>

<llo_original>
// kernel: tpu_custom_call.1
$region0: #{tpu_custom_call.1}
  #allocation0 [shape = 'u32[]', space=smem, size = 0x4, offset = 0x4, fixed_abs, tag = 'smem constant byte address 0x4 - core index']
  #allocation1 [shape = 'u32[144,128]{1,0:T(1,128)}', space=vmem, size = 0x12000, scoped, tag = 'internal scratch']
  %s0 = inlined_call_operand.hbm [shape: f32[8,64], index: 0, kind: input, shape index: {}]
  %s1 = inlined_call_operand.hbm [shape: f32[8,128], index: 1, kind: output, shape index: {}]
  %s2 = sld [smem:[#allocation0]]
  $region18: #{tpu_custom_call.1} parent=0
    _
  %s4 = ssub.s32 1, %s2
  %s5 = scalar_select 0, %s4, %s2
  $region1: #{tpu_custom_call.1} parent=0
    #allocation2 [shape = 'u8[4096]{0}', space=vmem, size = 0x1000, scoped, tag = 'input window, operand 0, single buffered']
    #allocation3 [shape = 's32[1]{0}', space=sflag, size = 0x4, scoped, tag = 'scoped memory for tpu_custom_call.1']
    #allocation4 [shape = 's32[1]{0}', space=sflag, size = 0x4, scoped, tag = 'scoped memory for tpu_custom_call.1']
    #allocation5 [shape = 'u8[4096]{0}', space=vmem, size = 0x1000, scoped, tag = 'output window, operand 0, single buffered']
    %6 = vsyncpa [#allocation3], 0
    %7 = vsyncpa [#allocation4], 0
    // Predicated region
    $region2: #{tpu_custom_call.1} parent=1 // pred_check
      _
    $region3: #{tpu_custom_call.1} parent=1 // pred_check_branch
      %9 = sbr.rel (0) target = $region5
    $region4: #{tpu_custom_call.1} parent=1 // pred_region
      %s11 = ssub.s32 128, 128
      %12 = vsyncadd [#allocation3], %s11
      %s14 = sshll.u32 [#allocation2], 4
      %s15 = int_to_ptr.vmem [resolvable:$true] %s14
      %17 = dma.hbm_to_vmem [thread:$0]  %s0, 128, %s15, [#allocation3]
    $region5: #{tpu_custom_call.1} parent=1 // pred_fallthru
      _
    // Predicated region
    $region6: #{tpu_custom_call.1} parent=1 // pred_check
      _
    $region7: #{tpu_custom_call.1} parent=1 // pred_check_branch
      %19 = sbr.rel (0) target = $region9
    $region8: #{tpu_custom_call.1} parent=1 // pred_region
      %20 = dma.done [#allocation3], 128
    $region9: #{tpu_custom_call.1} parent=1 // pred_fallthru
      _
    %v21 = vld [vmem:[#allocation2] sm:$0xff]
    %vm22 = vcmask 523264
    %23 = vst.msk [vmem:[#allocation5] sm:$0xff] %vm22, %v21
    %25 = vrot.lane.b32.xlu0 %v21, 64
    %v26 = vpop.permute.xlu0 %25
    %vm28 = vcmask 1048064
    %29 = vst.msk [vmem:[#allocation5] sm:$0xff] %vm28, %v26
    // Predicated region
    $region10: #{tpu_custom_call.1} parent=1 // pred_check
      _
    $region11: #{tpu_custom_call.1} parent=1 // pred_check_branch
      %31 = sbr.rel (0) target = $region13
    $region12: #{tpu_custom_call.1} parent=1 // pred_region
      %s33 = ssub.s32 128, 128
      %34 = vsyncadd [#allocation4], %s33
      %s36 = sshll.u32 [#allocation5], 4
      %s37 = int_to_ptr.vmem [resolvable:$true] %s36
      %39 = dma.vmem_to_hbm [thread:$0]  %s37, 128, %s1, [#allocation4]
    $region13: #{tpu_custom_call.1} parent=1 // pred_fallthru
      _
    // Predicated region
    $region14: #{tpu_custom_call.1} parent=1 // pred_check
      _
    $region15: #{tpu_custom_call.1} parent=1 // pred_check_branch
      %41 = sbr.rel (0) target = $region17
    $region16: #{tpu_custom_call.1} parent=1 // pred_region
      %42 = dma.done [#allocation4], 128
    $region17: #{tpu_custom_call.1} parent=1 // pred_fallthru
      _
    %43 = vsyncpa [#allocation3], 1
    %44 = vsyncpa [#allocation4], 1

</llo_original>
